<compile_context>
chip_gen: v7x
topology: tpu7x:2x2x1
jax: 0.10.0
libtpu: 0.0.40
codegen_flags: <defaults>
</compile_context>

<pallas_src>
import functools

import jax
import jax.numpy as jnp
from jax.experimental import pallas as pl
from jax.experimental.pallas import tpu as pltpu

_NEG_BIG = -1e30  # finite "-inf" sentinel (avoids 0 * -inf = nan in the online update)


def _round_up(x, m):
    return (x + m - 1) // m * m


def _class_crossentropy_kernel(x_ref, t_ref, w_ref, num_ref, den_ref,
                               m_run, s_run, pw_run, pws_run,
                               *, n_rows, n_cols, mask_cols):
    # x_ref:   (tile_n, tile_c) logits block, native dtype
    # t_ref:   (tile_n, 1) i32 targets (constant across the class axis)
    # w_ref:   (1, tile_c) f32 class-weight block
    # num_ref/den_ref: (1, 1, 1) f32 per-row-tile partial outputs
    # m_run/s_run/pw_run/pws_run: (tile_n, 1) f32 online-LSE scratch accumulators
    i = pl.program_id(0)          # row-tile index   ("parallel")
    j = pl.program_id(1)          # class-block index ("arbitrary" reduction)

    @pl.when(j == 0)
    def _init():
        m_run[...] = jnp.full(m_run.shape, _NEG_BIG, dtype=jnp.float32)
        s_run[...] = jnp.zeros_like(s_run)
        pw_run[...] = jnp.zeros_like(pw_run)
        pws_run[...] = jnp.zeros_like(pws_run)

    x_nat = x_ref[...]
    tn, tc = x_nat.shape
    t = t_ref[...]                # (tn, 1) i32
    w = w_ref[...]                # (1, tc) f32

    col = jax.lax.broadcasted_iota(jnp.int32, (tn, tc), 1)
    t_loc = t - j * tc            # target column relative to this class block (i32)
    sel = col == t_loc            # (tn, tc) bool

    xf = x_nat.astype(jnp.float32)
    if mask_cols:
        # Last class block overhangs C: mask out-of-range columns for max/sum-exp.
        cvalid = col < (n_cols - j * tc)
        xf = jnp.where(cvalid, xf, _NEG_BIG)
        m_blk = jnp.max(xf, axis=1, keepdims=True)
    else:
        # Row max in the native dtype (exact); f32 only for the exp/lse path.
        m_blk = jnp.max(x_nat, axis=1, keepdims=True).astype(jnp.float32)

    m_prev = m_run[...]
    m_new = jnp.maximum(m_prev, m_blk)
    sh = xf - m_new                                        # shifted logits (<= 0)
    w_sel = jnp.where(sel, w, 0.0)                         # single fused select

    # Online log-sum-exp + picked-target accumulators (rescaled to the new max).
    s_run[...] = (s_run[...] * jnp.exp(m_prev - m_new)
                  + jnp.sum(jnp.exp(sh), axis=1, keepdims=True))
    pw_prev = pw_run[...]
    pws_run[...] = (pws_run[...] + pw_prev * (m_prev - m_new)
                    + jnp.sum(w_sel * sh, axis=1, keepdims=True))
    pw_run[...] = pw_prev + jnp.sum(w_sel, axis=1, keepdims=True)
    m_run[...] = m_new

    @pl.when(j == pl.num_programs(1) - 1)
    def _finalize():
        # per-row weighted NLL: w[t] * (log(sum exp(x - m)) - (x[t] - m))
        nll_num = pw_run[...] * jnp.log(s_run[...]) - pws_run[...]
        row = jax.lax.broadcasted_iota(jnp.int32, (tn, 1), 0) + i * tn
        valid = row < n_rows                                # mask ragged-tile rows
        num_ref[...] = jnp.sum(jnp.where(valid, nll_num, 0.0),
                               keepdims=True).reshape(1, 1, 1)
        den_ref[...] = jnp.sum(jnp.where(valid, pw_run[...], 0.0),
                               keepdims=True).reshape(1, 1, 1)


def class_crossentropy(inputs, targets, weights, *, tile_n=None, tile_c=None):
    """inputs: (N, C) logits (any float dtype); targets: (N,) int; weights: (C,)."""
    n, c = inputs.shape
    itemsize = jnp.dtype(inputs.dtype).itemsize
    sub = {4: 8, 2: 16, 1: 32}.get(itemsize, 8)            # sublane multiple per dtype
    n_ceil = _round_up(n, sub)

    # Per-generation VMEM budget (v5e/v6e: 128 MiB, v7x: 64 MiB per core).
    try:
        vmem_cap = int(getattr(pltpu.get_tpu_info(), "vmem_capacity_bytes", 64 << 20))
    except Exception:  # pragma: no cover - conservative fallback (v7x-sized)
        vmem_cap = 64 << 20
    data_budget = int(vmem_cap * 0.55)

    n_interm = 2 if itemsize == 4 else 3                   # f32 full-tile temporaries

    def per_row_bytes(tc):
        return (2 * tc * itemsize        # logits double buffer
                + n_interm * tc * 4      # f32 compute intermediates (cast/exp/select)
                + 2 * 128 * 4            # targets block (lane-padded), double-buffered
                + 4 * 128 * 4)           # four (tile_n, 1) f32 scratch accumulators

    # ---- class-axis block size: split only when a full-C block doesn't fit ----
    if tile_c is None:
        rows_wanted = max(sub, min(512, n_ceil))
        if per_row_bytes(c) * rows_wanted <= data_budget:
            tile_c = c
        else:
            tc = _round_up(c, 128)
            while tc > 128 and per_row_bytes(tc) * rows_wanted > data_budget:
                tc = max(128, _round_up(tc // 2, 128))
            tile_c = tc
    tile_c = int(tile_c)
    if tile_c >= c:
        tile_c = c                                          # single block covers all of C
    else:
        tile_c = max(128, (tile_c // 128) * 128)            # must be a 128-multiple

    # ---- row-tile size: byte-budget based (no hard row cap) ----
    if tile_n is None:
        tile_n = data_budget // max(1, per_row_bytes(tile_c))
    tile_n = int(tile_n)
    if tile_n >= n:
        tile_n = n                                          # exact fit, single row tile
    else:
        tile_n = max(sub, (tile_n // sub) * sub)

    grid_i = pl.cdiv(n, tile_n)
    grid_c = pl.cdiv(c, tile_c)
    mask_cols = (c % tile_c) != 0

    t2d = targets.astype(jnp.int32).reshape(n, 1)
    w2d = weights.astype(jnp.float32).reshape(1, c)

    est_need = per_row_bytes(tile_c) * tile_n + 2 * tile_c * 4 + (1 << 20)
    vmem_limit = int(min(max(int(est_need * 1.5), 32 << 20), int(vmem_cap * 0.9)))

    kernel = functools.partial(_class_crossentropy_kernel,
                               n_rows=n, n_cols=c, mask_cols=mask_cols)

    num, den = pl.pallas_call(
        kernel,
        out_shape=(jax.ShapeDtypeStruct((grid_i, 1, 1), jnp.float32),
                   jax.ShapeDtypeStruct((grid_i, 1, 1), jnp.float32)),
        grid=(grid_i, grid_c),
        in_specs=[
            pl.BlockSpec((tile_n, tile_c), lambda i, j: (i, j)),   # logits block
            pl.BlockSpec((tile_n, 1), lambda i, j: (i, 0)),        # targets row tile
            pl.BlockSpec((1, tile_c), lambda i, j: (0, j)),        # weights block
        ],
        out_specs=(
            pl.BlockSpec((1, 1, 1), lambda i, j: (i, 0, 0)),       # per-tile numerator
            pl.BlockSpec((1, 1, 1), lambda i, j: (i, 0, 0)),       # per-tile weight sum
        ),
        scratch_shapes=[
            pltpu.VMEM((tile_n, 1), jnp.float32),   # running row max
            pltpu.VMEM((tile_n, 1), jnp.float32),   # running sum exp(x - m)
            pltpu.VMEM((tile_n, 1), jnp.float32),   # picked weight w[t]
            pltpu.VMEM((tile_n, 1), jnp.float32),   # picked w[t]*(x[t] - m)
        ],
        compiler_params=pltpu.CompilerParams(
            dimension_semantics=("parallel", "arbitrary"),
            vmem_limit_bytes=vmem_limit,
        ),
        cost_estimate=pl.CostEstimate(
            flops=8 * n * c,
            transcendentals=n * c,
            bytes_accessed=n * c * itemsize + n * 4 + c * 4 + grid_i * 8,
        ),
    )(inputs, t2d, w2d)

    # Tiny final reduction + division in JAX (also megacore-friendly on v7x).
    # TODO(synk): no ignore_index / all-zero-selected-weight guard; like PyTorch,
    # a zero weight sum yields inf/nan.
    return jnp.sum(num) / jnp.sum(den)


def _reference(inputs, targets, weights):
    n, c = inputs.shape
    x = inputs.astype(jnp.float32)
    log_probs = jax.nn.log_softmax(x, axis=1)
    onehot = jax.nn.one_hot(targets, c, dtype=jnp.float32)
    wmat = jnp.broadcast_to(weights.reshape(1, c).astype(jnp.float32), (n, c))
    ratio = n / jnp.sum(wmat * onehot)
    return jnp.sum(wmat * (-onehot) * log_probs) / n * ratio


if __name__ == "__main__":
    key = jax.random.PRNGKey(0)
    k1, k2, k3 = jax.random.split(key, 3)

    # Case 1: small batch, single block in both axes (default tiling).
    N, C = 8, 16
    inputs = jax.random.normal(k1, (N, C), dtype=jnp.float32)
    targets = jax.random.randint(k2, (N,), 0, C, dtype=jnp.int32)
    weights = jax.random.uniform(k3, (C,), dtype=jnp.float32, minval=0.5, maxval=2.0)
    loss = class_crossentropy(inputs, targets, weights)
    jax.block_until_ready(loss)
    ref = _reference(inputs, targets, weights)
    assert jnp.allclose(loss, ref, rtol=1e-5, atol=1e-5), (loss, ref)

    # Case 2: N not a multiple of the row tile -> multi-step "parallel" axis,
    # ragged last row block exercises the in-kernel row mask (no host padding).
    k4, k5, k6 = jax.random.split(k3, 3)
    N2, C2 = 37, 128
    inputs2 = jax.random.normal(k4, (N2, C2), dtype=jnp.float32)
    targets2 = jax.random.randint(k5, (N2,), 0, C2, dtype=jnp.int32)
    weights2 = jax.random.uniform(k6, (C2,), dtype=jnp.float32, minval=0.5, maxval=2.0)
    loss2 = class_crossentropy(inputs2, targets2, weights2, tile_n=16)
    jax.block_until_ready(loss2)
    ref2 = _reference(inputs2, targets2, weights2)
    assert jnp.allclose(loss2, ref2, rtol=1e-5, atol=1e-5), (loss2, ref2)

    # Case 3: class-axis split with ragged C and ragged N -> exercises the online
    # log-sum-exp accumulators, the column mask and the row mask together.
    k7, k8, k9 = jax.random.split(k6, 3)
    N3, C3 = 21, 200
    inputs3 = jax.random.normal(k7, (N3, C3), dtype=jnp.float32)
    targets3 = jax.random.randint(k8, (N3,), 0, C3, dtype=jnp.int32)
    weights3 = jax.random.uniform(k9, (C3,), dtype=jnp.float32, minval=0.5, maxval=2.0)
    loss3 = class_crossentropy(inputs3, targets3, weights3, tile_n=16, tile_c=128)
    jax.block_until_ready(loss3)
    ref3 = _reference(inputs3, targets3, weights3)
    assert jnp.allclose(loss3, ref3, rtol=1e-5, atol=1e-5), (loss3, ref3)

    # Case 4: bf16 inputs through the split-C path (native-dtype streaming + f32 math).
    k10, k11, k12 = jax.random.split(k9, 3)
    N4, C4 = 24, 320
    inputs4 = jax.random.normal(k10, (N4, C4), dtype=jnp.float32).astype(jnp.bfloat16)
    targets4 = jax.random.randint(k11, (N4,), 0, C4, dtype=jnp.int32)
    weights4 = jax.random.uniform(k12, (C4,), dtype=jnp.float32, minval=0.5, maxval=2.0)
    loss4 = class_crossentropy(inputs4, targets4, weights4, tile_n=16, tile_c=128)
    jax.block_until_ready(loss4)
    ref4 = _reference(inputs4, targets4, weights4)
    assert jnp.allclose(loss4, ref4, rtol=1e-4, atol=1e-4), (loss4, ref4)

    print("KERNEL_OK")
</pallas_src>

<mosaic_0001>
module attributes {stable_mosaic.version = 11 : i64} {
  func.func @_class_crossentropy_kernel(%arg0: i32, %arg1: i32, %arg2: memref<8x16xf32, #tpu.memory_space<vmem>>, %arg3: memref<8x1xi32, #tpu.memory_space<vmem>>, %arg4: memref<1x16xf32, #tpu.memory_space<vmem>>, %arg5: memref<1x1x1xf32, #tpu.memory_space<vmem>>, %arg6: memref<1x1x1xf32, #tpu.memory_space<vmem>>, %arg7: memref<8x1xf32, #tpu.memory_space<vmem>>, %arg8: memref<8x1xf32, #tpu.memory_space<vmem>>, %arg9: memref<8x1xf32, #tpu.memory_space<vmem>>, %arg10: memref<8x1xf32, #tpu.memory_space<vmem>>) attributes {dimension_semantics = [#tpu.dimension_semantics<parallel>, #tpu.dimension_semantics<arbitrary>], iteration_bounds = array<i64: 1, 1>, scalar_prefetch = 0 : i64, scratch_operands = 4 : i64, tpu.core_type = #tpu.core_type<tc>, window_params = [{transform_indices = @transform_0, window_bounds = array<i64: 8, 16>}, {transform_indices = @transform_1, window_bounds = array<i64: 8, 1>}, {transform_indices = @transform_2, window_bounds = array<i64: 1, 16>}, {transform_indices = @transform_3, window_bounds = array<i64: 1, 1, 1>}, {transform_indices = @transform_4, window_bounds = array<i64: 1, 1, 1>}]} {
    %c0_i32 = arith.constant 0 : i32
    %0 = arith.cmpi eq, %arg1, %c0_i32 : i32
    %1 = arith.extui %0 : i1 to i32
    %c0_i32_0 = arith.constant 0 : i32
    %2 = arith.cmpi ne, %1, %c0_i32_0 : i32
    scf.if %2 {
      %cst_28 = arith.constant -1.000000e+30 : f32
      %49 = vector.broadcast %cst_28 : f32 to vector<8x1xf32>
      %c0_29 = arith.constant 0 : index
      %c0_30 = arith.constant 0 : index
      %50 = vector.load %arg7[%c0_29, %c0_30] : memref<8x1xf32, #tpu.memory_space<vmem>>, vector<8x1xf32>
      tpu.vector_store %arg7[%c0_29, %c0_30], %49 {strides = array<i32>} : memref<8x1xf32, #tpu.memory_space<vmem>>, vector<8x1xf32>,
      %cst_31 = arith.constant 0.000000e+00 : f32
      %51 = vector.broadcast %cst_31 : f32 to vector<8x1xf32>
      %c0_32 = arith.constant 0 : index
      %c0_33 = arith.constant 0 : index
      %52 = vector.load %arg8[%c0_32, %c0_33] : memref<8x1xf32, #tpu.memory_space<vmem>>, vector<8x1xf32>
      tpu.vector_store %arg8[%c0_32, %c0_33], %51 {strides = array<i32>} : memref<8x1xf32, #tpu.memory_space<vmem>>, vector<8x1xf32>,
      %cst_34 = arith.constant 0.000000e+00 : f32
      %53 = vector.broadcast %cst_34 : f32 to vector<8x1xf32>
      %c0_35 = arith.constant 0 : index
      %c0_36 = arith.constant 0 : index
      %54 = vector.load %arg9[%c0_35, %c0_36] : memref<8x1xf32, #tpu.memory_space<vmem>>, vector<8x1xf32>
      tpu.vector_store %arg9[%c0_35, %c0_36], %53 {strides = array<i32>} : memref<8x1xf32, #tpu.memory_space<vmem>>, vector<8x1xf32>,
      %cst_37 = arith.constant 0.000000e+00 : f32
      %55 = vector.broadcast %cst_37 : f32 to vector<8x1xf32>
      %c0_38 = arith.constant 0 : index
      %c0_39 = arith.constant 0 : index
      %56 = vector.load %arg10[%c0_38, %c0_39] : memref<8x1xf32, #tpu.memory_space<vmem>>, vector<8x1xf32>
      tpu.vector_store %arg10[%c0_38, %c0_39], %55 {strides = array<i32>} : memref<8x1xf32, #tpu.memory_space<vmem>>, vector<8x1xf32>,
    } else {
    }
    %c0 = arith.constant 0 : index
    %c0_1 = arith.constant 0 : index
    %3 = vector.load %arg2[%c0, %c0_1] : memref<8x16xf32, #tpu.memory_space<vmem>>, vector<8x16xf32>
    %c0_2 = arith.constant 0 : index
    %c0_3 = arith.constant 0 : index
    %4 = vector.load %arg3[%c0_2, %c0_3] : memref<8x1xi32, #tpu.memory_space<vmem>>, vector<8x1xi32>
    %c0_4 = arith.constant 0 : index
    %c0_5 = arith.constant 0 : index
    %5 = vector.load %arg4[%c0_4, %c0_5] : memref<1x16xf32, #tpu.memory_space<vmem>>, vector<1x16xf32>
    %6 = tpu.iota {dimensions = array<i32: 1>} : vector<8x16xi32>
    %c16_i32 = arith.constant 16 : i32
    %7 = arith.muli %arg1, %c16_i32 : i32
    %8 = vector.broadcast %7 : i32 to vector<8x1xi32>
    %9 = arith.subi %4, %8 : vector<8x1xi32>
    %10 = vector.broadcast %9 : vector<8x1xi32> to vector<8x16xi32>
    %11 = arith.cmpi eq, %6, %10 : vector<8x16xi32>
    %cst = arith.constant dense<0xFF800000> : vector<8xf32>
    %12 = vector.multi_reduction <maximumf>, %3, %cst [1] : vector<8x16xf32> to vector<8xf32>
    %13 = vector.shape_cast %12 : vector<8xf32> to vector<8x1xf32>
    %c0_6 = arith.constant 0 : index
    %c0_7 = arith.constant 0 : index
    %14 = vector.load %arg7[%c0_6, %c0_7] : memref<8x1xf32, #tpu.memory_space<vmem>>, vector<8x1xf32>
    %15 = arith.maximumf %14, %13 : vector<8x1xf32>
    %16 = vector.broadcast %15 : vector<8x1xf32> to vector<8x16xf32>
    %17 = arith.subf %3, %16 : vector<8x16xf32>
    %cst_8 = arith.constant 0.000000e+00 : f32
    %18 = vector.shape_cast %5 : vector<1x16xf32> to vector<1x16xf32>
    %19 = vector.broadcast %18 : vector<1x16xf32> to vector<8x16xf32>
    %20 = vector.broadcast %cst_8 : f32 to vector<8x16xf32>
    %21 = arith.select %11, %19, %20 : vector<8x16xi1>, vector<8x16xf32>
    %c0_9 = arith.constant 0 : index
    %c0_10 = arith.constant 0 : index
    %22 = vector.load %arg8[%c0_9, %c0_10] : memref<8x1xf32, #tpu.memory_space<vmem>>, vector<8x1xf32>
    %23 = arith.subf %14, %15 : vector<8x1xf32>
    %24 = math.exp %23 : vector<8x1xf32>
    %25 = arith.mulf %22, %24 : vector<8x1xf32>
    %26 = math.exp %17 : vector<8x16xf32>
    %cst_11 = arith.constant dense<0.000000e+00> : vector<8xf32>
    %27 = vector.multi_reduction <add>, %26, %cst_11 [1] : vector<8x16xf32> to vector<8xf32>
    %28 = vector.shape_cast %27 : vector<8xf32> to vector<8x1xf32>
    %29 = arith.addf %25, %28 : vector<8x1xf32>
    %c0_12 = arith.constant 0 : index
    %c0_13 = arith.constant 0 : index
    %30 = vector.load %arg8[%c0_12, %c0_13] : memref<8x1xf32, #tpu.memory_space<vmem>>, vector<8x1xf32>
    tpu.vector_store %arg8[%c0_12, %c0_13], %29 {strides = array<i32>} : memref<8x1xf32, #tpu.memory_space<vmem>>, vector<8x1xf32>,
    %c0_14 = arith.constant 0 : index
    %c0_15 = arith.constant 0 : index
    %31 = vector.load %arg9[%c0_14, %c0_15] : memref<8x1xf32, #tpu.memory_space<vmem>>, vector<8x1xf32>
    %c0_16 = arith.constant 0 : index
    %c0_17 = arith.constant 0 : index
    %32 = vector.load %arg10[%c0_16, %c0_17] : memref<8x1xf32, #tpu.memory_space<vmem>>, vector<8x1xf32>
    %33 = arith.subf %14, %15 : vector<8x1xf32>
    %34 = arith.mulf %31, %33 : vector<8x1xf32>
    %35 = arith.addf %32, %34 : vector<8x1xf32>
    %36 = arith.mulf %21, %17 : vector<8x16xf32>
    %cst_18 = arith.constant dense<0.000000e+00> : vector<8xf32>
    %37 = vector.multi_reduction <add>, %36, %cst_18 [1] : vector<8x16xf32> to vector<8xf32>
    %38 = vector.shape_cast %37 : vector<8xf32> to vector<8x1xf32>
    %39 = arith.addf %35, %38 : vector<8x1xf32>
    %c0_19 = arith.constant 0 : index
    %c0_20 = arith.constant 0 : index
    %40 = vector.load %arg10[%c0_19, %c0_20] : memref<8x1xf32, #tpu.memory_space<vmem>>, vector<8x1xf32>
    tpu.vector_store %arg10[%c0_19, %c0_20], %39 {strides = array<i32>} : memref<8x1xf32, #tpu.memory_space<vmem>>, vector<8x1xf32>,
    %cst_21 = arith.constant dense<0.000000e+00> : vector<8xf32>
    %41 = vector.multi_reduction <add>, %21, %cst_21 [1] : vector<8x16xf32> to vector<8xf32>
    %42 = vector.shape_cast %41 : vector<8xf32> to vector<8x1xf32>
    %43 = arith.addf %31, %42 : vector<8x1xf32>
    %c0_22 = arith.constant 0 : index
    %c0_23 = arith.constant 0 : index
    %44 = vector.load %arg9[%c0_22, %c0_23] : memref<8x1xf32, #tpu.memory_space<vmem>>, vector<8x1xf32>
    tpu.vector_store %arg9[%c0_22, %c0_23], %43 {strides = array<i32>} : memref<8x1xf32, #tpu.memory_space<vmem>>, vector<8x1xf32>,
    %c0_24 = arith.constant 0 : index
    %c0_25 = arith.constant 0 : index
    %45 = vector.load %arg7[%c0_24, %c0_25] : memref<8x1xf32, #tpu.memory_space<vmem>>, vector<8x1xf32>
    tpu.vector_store %arg7[%c0_24, %c0_25], %15 {strides = array<i32>} : memref<8x1xf32, #tpu.memory_space<vmem>>, vector<8x1xf32>,
    %c0_i32_26 = arith.constant 0 : i32
    %46 = arith.cmpi eq, %arg1, %c0_i32_26 : i32
    %47 = arith.extui %46 : i1 to i32
    %c0_i32_27 = arith.constant 0 : i32
    %48 = arith.cmpi ne, %47, %c0_i32_27 : i32
    scf.if %48 {
      %c0_28 = arith.constant 0 : index
      %c0_29 = arith.constant 0 : index
      %49 = vector.load %arg9[%c0_28, %c0_29] : memref<8x1xf32, #tpu.memory_space<vmem>>, vector<8x1xf32>
      %c0_30 = arith.constant 0 : index
      %c0_31 = arith.constant 0 : index
      %50 = vector.load %arg8[%c0_30, %c0_31] : memref<8x1xf32, #tpu.memory_space<vmem>>, vector<8x1xf32>
      %51 = math.log %50 : vector<8x1xf32>
      %52 = arith.mulf %49, %51 : vector<8x1xf32>
      %c0_32 = arith.constant 0 : index
      %c0_33 = arith.constant 0 : index
      %53 = vector.load %arg10[%c0_32, %c0_33] : memref<8x1xf32, #tpu.memory_space<vmem>>, vector<8x1xf32>
      %54 = arith.subf %52, %53 : vector<8x1xf32>
      %55 = tpu.iota {dimensions = array<i32: 0>} : vector<8x1xi32>
      %c8_i32 = arith.constant 8 : i32
      %56 = arith.muli %arg0, %c8_i32 : i32
      %57 = vector.broadcast %56 : i32 to vector<8x1xi32>
      %58 = arith.addi %55, %57 : vector<8x1xi32>
      %c8_i32_34 = arith.constant 8 : i32
      %59 = vector.broadcast %c8_i32_34 : i32 to vector<8x1xi32>
      %60 = arith.cmpi slt, %58, %59 : vector<8x1xi32>
      %cst_35 = arith.constant 0.000000e+00 : f32
      %61 = vector.broadcast %cst_35 : f32 to vector<8x1xf32>
      %62 = arith.select %60, %54, %61 : vector<8x1xi1>, vector<8x1xf32>
      %63 = vector.shape_cast %62 : vector<8x1xf32> to vector<1x8x1xf32>
      %cst_36 = arith.constant dense<0.000000e+00> : vector<1xf32>
      %64 = vector.multi_reduction <add>, %63, %cst_36 [1, 2] : vector<1x8x1xf32> to vector<1xf32>
      %65 = vector.shape_cast %64 : vector<1xf32> to vector<1x1x1xf32>
      %66 = vector.extract %65[0, 0, 0] : f32 from vector<1x1x1xf32>
      %67 = vector.broadcast %66 : f32 to vector<1x1xf32>
      %68 = vector.shape_cast %67 : vector<1x1xf32> to vector<1x1x1xf32>
      %c0_37 = arith.constant 0 : index
      %c0_38 = arith.constant 0 : index
      %c0_39 = arith.constant 0 : index
      %69 = vector.load %arg5[%c0_37, %c0_38, %c0_39] : memref<1x1x1xf32, #tpu.memory_space<vmem>>, vector<1x1x1xf32>
      tpu.vector_store %arg5[%c0_37, %c0_38, %c0_39], %68 {strides = array<i32>} : memref<1x1x1xf32, #tpu.memory_space<vmem>>, vector<1x1x1xf32>,
      %c0_40 = arith.constant 0 : index
      %c0_41 = arith.constant 0 : index
      %70 = vector.load %arg9[%c0_40, %c0_41] : memref<8x1xf32, #tpu.memory_space<vmem>>, vector<8x1xf32>
      %cst_42 = arith.constant 0.000000e+00 : f32
      %71 = vector.broadcast %cst_42 : f32 to vector<8x1xf32>
      %72 = arith.select %60, %70, %71 : vector<8x1xi1>, vector<8x1xf32>
      %73 = vector.shape_cast %72 : vector<8x1xf32> to vector<1x8x1xf32>
      %cst_43 = arith.constant dense<0.000000e+00> : vector<1xf32>
      %74 = vector.multi_reduction <add>, %73, %cst_43 [1, 2] : vector<1x8x1xf32> to vector<1xf32>
      %75 = vector.shape_cast %74 : vector<1xf32> to vector<1x1x1xf32>
      %76 = vector.extract %75[0, 0, 0] : f32 from vector<1x1x1xf32>
      %77 = vector.broadcast %76 : f32 to vector<1x1xf32>
      %78 = vector.shape_cast %77 : vector<1x1xf32> to vector<1x1x1xf32>
      %c0_44 = arith.constant 0 : index
      %c0_45 = arith.constant 0 : index
      %c0_46 = arith.constant 0 : index
      %79 = vector.load %arg6[%c0_44, %c0_45, %c0_46] : memref<1x1x1xf32, #tpu.memory_space<vmem>>, vector<1x1x1xf32>
      tpu.vector_store %arg6[%c0_44, %c0_45, %c0_46], %78 {strides = array<i32>} : memref<1x1x1xf32, #tpu.memory_space<vmem>>, vector<1x1x1xf32>,
    } else {
    }
    return
  }
  func.func @transform_0(%arg0: i32, %arg1: i32) -> (i32, i32) {
    %c0_i32 = arith.constant 0 : i32
    return %arg0, %arg1 : i32, i32
  }
  func.func @transform_1(%arg0: i32, %arg1: i32) -> (i32, i32) {
    %c0_i32 = arith.constant 0 : i32
    %c0_i32_0 = arith.constant 0 : i32
    return %arg0, %c0_i32 : i32, i32
  }
  func.func @transform_2(%arg0: i32, %arg1: i32) -> (i32, i32) {
    %c0_i32 = arith.constant 0 : i32
    %c0_i32_0 = arith.constant 0 : i32
    return %c0_i32, %arg1 : i32, i32
  }
  func.func @transform_3(%arg0: i32, %arg1: i32) -> (i32, i32, i32) {
    %c0_i32 = arith.constant 0 : i32
    %c0_i32_0 = arith.constant 0 : i32
    %c0_i32_1 = arith.constant 0 : i32
    return %arg0, %c0_i32, %c0_i32_0 : i32, i32, i32
  }
  func.func @transform_4(%arg0: i32, %arg1: i32) -> (i32, i32, i32) {
    %c0_i32 = arith.constant 0 : i32
    %c0_i32_0 = arith.constant 0 : i32
    %c0_i32_1 = arith.constant 0 : i32
    return %arg0, %c0_i32, %c0_i32_0 : i32, i32, i32
  }
}

</mosaic_0001>

<llo_original>
// kernel: tpu_custom_call.1
$region0: #{tpu_custom_call.1}
  #allocation0 [shape = 'u32[]', space=smem, size = 0x4, offset = 0x4, fixed_abs, tag = 'smem constant byte address 0x4 - core index']
  #allocation1 [shape = 'u32[144,128]{1,0:T(1,128)}', space=vmem, size = 0x12000, scoped, tag = 'internal scratch']
  #allocation2 [shape = 'f32[8,1]{1,0:T(8,128)}', space=vmem, size = 0x1000, scoped, tag = 'scratch operand']
  #allocation3 [shape = 'f32[8,1]{1,0:T(8,128)}', space=vmem, size = 0x1000, scoped, tag = 'scratch operand']
  #allocation4 [shape = 'f32[8,1]{1,0:T(8,128)}', space=vmem, size = 0x1000, scoped, tag = 'scratch operand']
  #allocation5 [shape = 'f32[8,1]{1,0:T(8,128)}', space=vmem, size = 0x1000, scoped, tag = 'scratch operand']
  %s0 = inlined_call_operand.vmem [shape: f32[8,16], index: 0, kind: input, shape index: {}]
  %s1 = inlined_call_operand.vmem [shape: s32[8,1], index: 1, kind: input, shape index: {}]
  %s2 = inlined_call_operand.vmem [shape: f32[1,16], index: 2, kind: input, shape index: {}]
  %s3 = inlined_call_operand.hbm [shape: f32[1,1,1], index: 3, kind: output, shape index: {0}]
  %s4 = inlined_call_operand.hbm [shape: f32[1,1,1], index: 4, kind: output, shape index: {1}]
  %5 = xla_tuple %s3, %s4
  %s6 = sld [smem:[#allocation0]]
  $region38: #{tpu_custom_call.1} parent=0
    _
  %s8 = ssub.s32 1, %s6
  %s9 = scalar_select 0, %s8, %s6
  $region1: #{tpu_custom_call.1} parent=0
    #allocation6 [shape = 'u8[512]{0}', space=vmem, size = 0x400, scoped, tag = 'output window, operand 0, single buffered']
    #allocation7 [shape = 's32[1]{0}', space=sflag, size = 0x4, scoped, tag = 'scoped memory for tpu_custom_call.1']
    #allocation8 [shape = 'u8[512]{0}', space=vmem, size = 0x400, scoped, tag = 'output window, operand 1, single buffered']
    #allocation9 [shape = 's32[1]{0}', space=sflag, size = 0x4, scoped, tag = 'scoped memory for tpu_custom_call.1']
    %10 = vsyncpa [#allocation7], 0
    %11 = vsyncpa [#allocation9], 0
    // Predicated region
    $region2: #{tpu_custom_call.1} parent=1 // pred_check
      _
    $region3: #{tpu_custom_call.1} parent=1 // pred_check_branch
      %13 = sbr.rel (0) target = $region5
    $region4: #{tpu_custom_call.1} parent=1 // pred_region
      _
    $region5: #{tpu_custom_call.1} parent=1 // pred_fallthru
      _
    // Predicated region
    $region6: #{tpu_custom_call.1} parent=1 // pred_check
      _
    $region7: #{tpu_custom_call.1} parent=1 // pred_check_branch
      %15 = sbr.rel (0) target = $region9
    $region8: #{tpu_custom_call.1} parent=1 // pred_region
      _
    $region9: #{tpu_custom_call.1} parent=1 // pred_fallthru
      _
    // Predicated region
    $region10: #{tpu_custom_call.1} parent=1 // pred_check
      _
    $region11: #{tpu_custom_call.1} parent=1 // pred_check_branch
      %17 = sbr.rel (0) target = $region13
    $region12: #{tpu_custom_call.1} parent=1 // pred_region
      _
    $region13: #{tpu_custom_call.1} parent=1 // pred_fallthru
      _
    %p18 = scmp.eq.s32.totalorder 0, 0
    // Predicated region
    $region14: #{tpu_custom_call.1} parent=1 // pred_check
      %p19 = pneg %p18
    $region15: #{tpu_custom_call.1} parent=1 // pred_check_branch
      %21 = sbr.rel (%p19) target = $region17
    $region16: #{tpu_custom_call.1} parent=1 // pred_region
      %vm22 = vcmask 7168
      %23 = vst.msk [vmem:[#allocation2] sm:$0xff] %vm22, -1e+30
      %24 = vst.msk [vmem:[#allocation3] sm:$0xff] %vm22, 0.0
      %25 = vst.msk [vmem:[#allocation4] sm:$0xff] %vm22, 0.0
      %26 = vst.msk [vmem:[#allocation5] sm:$0xff] %vm22, 0.0
    $region17: #{tpu_custom_call.1} parent=1 // pred_fallthru
      _
    %v27 = vld [vmem:[%s0] sm:$0xff]
    %v28 = vld [vmem:[%s1] sm:$0xff]
    %v29 = vld [vmem:[%s2] sm:$0x1]
    %v30 = vlaneseq
    %v31 = vand.u32 %v30, 127
    %s32 = smul.u32 0, 16
    %v33 = vstv %s32
    %v34 = vsub.s32 %v28, %v33
    %35 = vset.pattern.permute.xlu0 0
    %36 = vperm.xlu0 %35, %v34
    %v37 = vpop.permute.xlu0 %36
    %vm38 = vcmp.eq.s32.totalorder %v31, %v37
    %vm39 = vcmask 130048
    %v40 = vsel %vm39, %v27, -inf
    %41 = vmax.xlane.f32.xlu0 %v40
    %v42 = vpop.xlane.xlu0 %41
    %v43 = vld [vmem:[#allocation2] sm:$0xff]
    %v44 = vmax.f32 %v43, %v42
    %46 = vset.pattern.permute.xlu0 0
    %47 = vperm.xlu0 %46, %v44
    %v48 = vpop.permute.xlu0 %47
    %v50 = vsub.f32 %v27, %v48
    %v52 = vlaneseq
    %v53 = vshrl.u32 %v52, 7
    %v54 = vsub.s32 0, %v53
    %v55 = vrot.slane %v29, %v54
    %v57 = vsel %vm38, %v55, 0.0
    %v58 = vld [vmem:[#allocation3] sm:$0xff]
    %v59 = vsub.f32 %v43, %v44
    %v60 = vmul.f32 %v59, 1.442695
    %v61 = vpow.pop %v60
    %v62 = vmul.f32 %v58, %v61
    %v63 = vmul.f32 %v50, 1.442695
    %v64 = vpow.pop %v63
    %v65 = vsel %vm39, %v64, 0.0
    %66 = vadd.xlane.f32.xlu0 %v65
    %v67 = vpop.xlane.xlu0 %66
    %v68 = vadd.f32 %v62, %v67
    %vm69 = vcmask 7168
    %70 = vst.msk [vmem:[#allocation3] sm:$0xff] %vm69, %v68
    %v71 = vld [vmem:[#allocation4] sm:$0xff]
    %v72 = vld [vmem:[#allocation5] sm:$0xff]
    %v73 = vmul.f32 %v71, %v59
    %v74 = vadd.f32 %v72, %v73
    %v75 = vmul.f32 %v57, %v50
    %v76 = vsel %vm39, %v75, 0.0
    %77 = vadd.xlane.f32.xlu0 %v76
    %v78 = vpop.xlane.xlu0 %77
    %v79 = vadd.f32 %v74, %v78
    %80 = vst.msk [vmem:[#allocation5] sm:$0xff] %vm69, %v79
    %v81 = vsel %vm39, %v57, 0.0
    %82 = vadd.xlane.f32.xlu0 %v81
    %v83 = vpop.xlane.xlu0 %82
    %v84 = vadd.f32 %v71, %v83
    %85 = vst.msk [vmem:[#allocation4] sm:$0xff] %vm69, %v84
    %86 = vst.msk [vmem:[#allocation2] sm:$0xff] %vm69, %v44
    // Predicated region
    $region18: #{tpu_custom_call.1} parent=1 // pred_check
      %p87 = pneg %p18
    $region19: #{tpu_custom_call.1} parent=1 // pred_check_branch
      %89 = sbr.rel (%p87) target = $region21
    $region20: #{tpu_custom_call.1} parent=1 // pred_region
      %v90 = vld [vmem:[#allocation4] sm:$0xff]
      %v91 = vld [vmem:[#allocation3] sm:$0xff]
      %v92 = vlog2.pop %v91
      %v93 = vmul.f32 %v92, 0.6931472
      %v94 = vmul.f32 %v90, %v93
      %v95 = vld [vmem:[#allocation5] sm:$0xff]
      %v96 = vsub.f32 %v94, %v95
      %v97 = vlaneseq
      %v98 = vshrl.u32 %v97, 7
      %s99 = smul.u32 0, 8
      %v100 = vstv %s99
      %v101 = vadd.s32 %v98, %v100
      %vm102 = vcmp.lt.s32.totalorder %v101, 8
      %v103 = vsel %vm102, %v96, 0.0
      %v104 = vsel %vm69, %v103, 0.0
      %105 = vadd.xlane.f32.xlu0 %v104
      %v106 = vpop.xlane.xlu0 %105
      %v107 = vrot.slane %v106, 4
      %v108 = vadd.f32 %v106, %v107
      %v109 = vrot.slane %v108, 2
      %v110 = vadd.f32 %v108, %v109
      %v111 = vrot.slane %v110, 1
      %v112 = vadd.f32 %v110, %v111
      %s113 = vtos %v112
      %v114 = vstv %s113
      %vm115 = vcmask 0
      %116 = vst.msk [vmem:[#allocation6] sm:$0x1] %vm115, %v114
      %v117 = vld [vmem:[#allocation4] sm:$0xff]
      %v118 = vsel %vm102, %v117, 0.0
      %v119 = vsel %vm69, %v118, 0.0
      %120 = vadd.xlane.f32.xlu0 %v119
      %v121 = vpop.xlane.xlu0 %120
      %v122 = vrot.slane %v121, 4
      %v123 = vadd.f32 %v121, %v122
      %v124 = vrot.slane %v123, 2
      %v125 = vadd.f32 %v123, %v124
      %v126 = vrot.slane %v125, 1
      %v127 = vadd.f32 %v125, %v126
      %s128 = vtos %v127
      %v129 = vstv %s128
      %130 = vst.msk [vmem:[#allocation8] sm:$0x1] %vm115, %v129
    $region21: #{tpu_custom_call.1} parent=1 // pred_fallthru
      _
    // Predicated region
    $region22: #{tpu_custom_call.1} parent=1 // pred_check
      _
    $region23: #{tpu_custom_call.1} parent=1 // pred_check_branch
      %132 = sbr.rel (0) target = $region25
    $region24: #{tpu_custom_call.1} parent=1 // pred_region
      %s134 = ssub.s32 16, 16
      %135 = vsyncadd [#allocation7], %s134
      %s137 = sshll.u32 [#allocation6], 4
      %s138 = int_to_ptr.vmem [resolvable:$true] %s137
      %140 = dma.vmem_to_hbm [thread:$0]  %s138, 16, %s3, [#allocation7]
    $region25: #{tpu_custom_call.1} parent=1 // pred_fallthru
      _
    // Predicated region
    $region26: #{tpu_custom_call.1} parent=1 // pred_check
      _
    $region27: #{tpu_custom_call.1} parent=1 // pred_check_branch
      %142 = sbr.rel (0) target = $region29
    $region28: #{tpu_custom_call.1} parent=1 // pred_region
      %s144 = ssub.s32 16, 16
      %145 = vsyncadd [#allocation9], %s144
      %s147 = sshll.u32 [#allocation8], 4
      %s148 = int_to_ptr.vmem [resolvable:$true] %s147
      %150 = dma.vmem_to_hbm [thread:$0]  %s148, 16, %s4, [#allocation9]
    $region29: #{tpu_custom_call.1} parent=1 // pred_fallthru
      _
    // Predicated region
    $region30: #{tpu_custom_call.1} parent=1 // pred_check
      _
    $region31: #{tpu_custom_call.1} parent=1 // pred_check_branch
      %152 = sbr.rel (0) target = $region33
    $region32: #{tpu_custom_call.1} parent=1 // pred_region
      %153 = dma.done [#allocation7], 16
    $region33: #{tpu_custom_call.1} parent=1 // pred_fallthru
      _
    // Predicated region
    $region34: #{tpu_custom_call.1} parent=1 // pred_check
      _
    $region35: #{tpu_custom_call.1} parent=1 // pred_check_branch
      %155 = sbr.rel (0) target = $region37
    $region36: #{tpu_custom_call.1} parent=1 // pred_region
      %156 = dma.done [#allocation9], 16
    $region37: #{tpu_custom_call.1} parent=1 // pred_fallthru
      _
    %157 = vsyncpa [#allocation7], 1
    %158 = vsyncpa [#allocation9], 1

</llo_original>
